<compile_context>
chip_gen: v7x
topology: tpu7x:2x2x1
jax: 0.10.0
libtpu: 0.0.40
codegen_flags: <defaults>
</compile_context>

<pallas_src>
import functools

import jax
import jax.numpy as jnp
from jax.experimental import pallas as pl
from jax.experimental.pallas import tpu as pltpu


def _round_up(n, m):
    return ((n + m - 1) // m) * m


def _cdiv(a, b):
    return (a + b - 1) // b


def kalmannet_kernel(x_ref, w1_ref, b1_ref, w2_ref, b2_ref, w3_ref, b3_ref, o_ref):
    # Fused 3-layer MLP on one (TB, in_dim) batch tile, entirely in VMEM.
    x = x_ref[...]
    h1 = jnp.dot(x, w1_ref[...], preferred_element_type=jnp.float32) + b1_ref[...]
    h1 = jnp.maximum(h1, 0.0)
    h2 = jnp.dot(h1, w2_ref[...], preferred_element_type=jnp.float32) + b2_ref[...]
    h2 = jnp.maximum(h2, 0.0)
    y = jnp.dot(h2, w3_ref[...], preferred_element_type=jnp.float32) + b3_ref[...]
    o_ref[...] = jnp.maximum(y, 0.0).astype(o_ref.dtype)  # final ReLU per the PyTorch spec


def _choose_tb(B, tb):
    """Sublane-aligned batch tile; >=2 grid steps for medium/large B (v7x megacore)."""
    if B <= 64:
        return _round_up(B, 8)
    half = _round_up(_cdiv(B, 2), 8)
    return min(tb, half)


def kalmannet_forward(x, params, *, tb=1024):
    """x: (B, input_size) float32. params: dict of (w1,b1,w2,b2,w3,b3), weights (in, out)."""
    w1, b1, w2, b2, w3, b3 = (params[k] for k in ("w1", "b1", "w2", "b2", "w3", "b3"))
    B, in_dim = x.shape
    H = w1.shape[1]
    out_dim = w3.shape[1]

    TB = _choose_tb(B, tb)
    grid = (_cdiv(B, TB),)

    # Weights / biases stay VMEM-resident across grid steps (constant index_maps).
    const = lambda shape: pl.BlockSpec(shape, lambda i: tuple(0 for _ in shape))

    flops = 2 * B * (in_dim * H + H * H + H * out_dim)
    bytes_accessed = 4 * (
        x.size + w1.size + b1.size + w2.size + b2.size + w3.size + b3.size + B * out_dim
    )

    out = pl.pallas_call(
        kalmannet_kernel,
        out_shape=jax.ShapeDtypeStruct((B, out_dim), jnp.float32),
        grid=grid,
        in_specs=[
            pl.BlockSpec((TB, in_dim), lambda i: (i, 0)),  # x: tiled over batch, full rows
            const(w1.shape), const(b1.shape),              # resident weights / biases
            const(w2.shape), const(b2.shape),
            const(w3.shape), const(b3.shape),
        ],
        out_specs=pl.BlockSpec((TB, out_dim), lambda i: (i, 0)),
        compiler_params=pltpu.CompilerParams(
            dimension_semantics=("parallel",),  # shards batch tiles across TCs on v7x
        ),
        cost_estimate=pl.CostEstimate(
            flops=flops, bytes_accessed=bytes_accessed, transcendentals=0
        ),
    )(x, w1, b1, w2, b2, w3, b3)

    return out


def init_params(key, input_size=200, hidden_size=128, out_size=3):
    """Deterministic PyTorch-style (Kaiming-uniform-ish) init; weights stored as (in, out)."""
    def linear(k, fan_in, fan_out):
        kw, kb = jax.random.split(k)
        bound = 1.0 / jnp.sqrt(jnp.float32(fan_in))
        w = jax.random.uniform(kw, (fan_in, fan_out), jnp.float32, -bound, bound)
        b = jax.random.uniform(kb, (1, fan_out), jnp.float32, -bound, bound)
        return w, b

    k1, k2, k3 = jax.random.split(key, 3)
    w1, b1 = linear(k1, input_size, hidden_size)
    w2, b2 = linear(k2, hidden_size, hidden_size)
    w3, b3 = linear(k3, hidden_size, out_size)
    return {"w1": w1, "b1": b1, "w2": w2, "b2": b2, "w3": w3, "b3": b3}


def reference_forward(x, p):
    h1 = jnp.maximum(x @ p["w1"] + p["b1"], 0.0)
    h2 = jnp.maximum(h1 @ p["w2"] + p["b2"], 0.0)
    # Final ReLU matches the PyTorch module: return torch.relu(fc3(x))
    return jnp.maximum(h2 @ p["w3"] + p["b3"], 0.0)


if __name__ == "__main__":
    key = jax.random.PRNGKey(0)
    kx, kp = jax.random.split(key)

    batch = 8
    input_size = 200
    x = jax.random.normal(kx, (batch, input_size), jnp.float32)
    params = init_params(kp, input_size=input_size, hidden_size=128, out_size=3)

    fwd = jax.jit(functools.partial(kalmannet_forward, tb=1024))
    out = jax.block_until_ready(fwd(x, params))

    ref = reference_forward(x, params)
    assert out.shape == (batch, 3), out.shape
    assert jnp.allclose(out, ref, atol=1e-5, rtol=1e-5), "mismatch vs reference"

    # Exercise a multi-step grid with a masked partial edge block (B=600 -> TB=304, 2 steps).
    xb = jax.random.normal(kx, (600, input_size), jnp.float32)
    outb = jax.block_until_ready(fwd(xb, params))
    refb = reference_forward(xb, params)
    assert outb.shape == (600, 3), outb.shape
    assert jnp.allclose(outb, refb, atol=1e-4, rtol=1e-4), "mismatch vs reference (large batch)"

    # TODO(synk): on v5e, if large-B profiles show MXU-bound behavior, cast x/weights to bf16
    # inside the kernel (f32 accumulation); kept f32 here to match the f32 PyTorch reference.
    print("KERNEL_OK")
</pallas_src>

<mosaic_0001>
module attributes {stable_mosaic.version = 11 : i64} {
  func.func @kalmannet_kernel(%arg0: i32, %arg1: memref<8x200xf32, #tpu.memory_space<vmem>>, %arg2: memref<200x128xf32, #tpu.memory_space<vmem>>, %arg3: memref<1x128xf32, #tpu.memory_space<vmem>>, %arg4: memref<128x128xf32, #tpu.memory_space<vmem>>, %arg5: memref<1x128xf32, #tpu.memory_space<vmem>>, %arg6: memref<128x3xf32, #tpu.memory_space<vmem>>, %arg7: memref<1x3xf32, #tpu.memory_space<vmem>>, %arg8: memref<8x3xf32, #tpu.memory_space<vmem>>) attributes {dimension_semantics = [#tpu.dimension_semantics<parallel>], iteration_bounds = array<i64: 1>, scalar_prefetch = 0 : i64, scratch_operands = 0 : i64, tpu.core_type = #tpu.core_type<tc>, window_params = [{transform_indices = @transform_0, window_bounds = array<i64: 8, 200>}, {pipeline_mode = #tpu.pipeline_mode<synchronous>, transform_indices = @transform_1, window_bounds = array<i64: 200, 128>}, {pipeline_mode = #tpu.pipeline_mode<synchronous>, transform_indices = @transform_2, window_bounds = array<i64: 1, 128>}, {pipeline_mode = #tpu.pipeline_mode<synchronous>, transform_indices = @transform_3, window_bounds = array<i64: 128, 128>}, {pipeline_mode = #tpu.pipeline_mode<synchronous>, transform_indices = @transform_4, window_bounds = array<i64: 1, 128>}, {pipeline_mode = #tpu.pipeline_mode<synchronous>, transform_indices = @transform_5, window_bounds = array<i64: 128, 3>}, {pipeline_mode = #tpu.pipeline_mode<synchronous>, transform_indices = @transform_6, window_bounds = array<i64: 1, 3>}, {transform_indices = @transform_7, window_bounds = array<i64: 8, 3>}]} {
    %c0 = arith.constant 0 : index
    %c0_0 = arith.constant 0 : index
    %0 = vector.load %arg1[%c0, %c0_0] : memref<8x200xf32, #tpu.memory_space<vmem>>, vector<8x200xf32>
    %c0_1 = arith.constant 0 : index
    %c0_2 = arith.constant 0 : index
    %1 = vector.load %arg2[%c0_1, %c0_2] : memref<200x128xf32, #tpu.memory_space<vmem>>, vector<200x128xf32>
    %cst = arith.constant dense<0.000000e+00> : vector<8x128xf32>
    %2 = tpu.matmul %0, %1, %cst {dimension_numbers = #tpu.dot_dimension_numbers<[1], [0], [0], [1], [0, 0, 1, 1], [], []>} : vector<8x200xf32>, vector<200x128xf32>, vector<8x128xf32> -> vector<8x128xf32>
    %c0_3 = arith.constant 0 : index
    %c0_4 = arith.constant 0 : index
    %3 = vector.load %arg3[%c0_3, %c0_4] : memref<1x128xf32, #tpu.memory_space<vmem>>, vector<1x128xf32>
    %4 = vector.broadcast %3 : vector<1x128xf32> to vector<8x128xf32>
    %5 = arith.addf %2, %4 : vector<8x128xf32>
    %cst_5 = arith.constant 0.000000e+00 : f32
    %6 = vector.broadcast %cst_5 : f32 to vector<8x128xf32>
    %7 = arith.maximumf %5, %6 : vector<8x128xf32>
    %c0_6 = arith.constant 0 : index
    %c0_7 = arith.constant 0 : index
    %8 = vector.load %arg4[%c0_6, %c0_7] : memref<128x128xf32, #tpu.memory_space<vmem>>, vector<128x128xf32>
    %cst_8 = arith.constant dense<0.000000e+00> : vector<8x128xf32>
    %9 = tpu.matmul %7, %8, %cst_8 {dimension_numbers = #tpu.dot_dimension_numbers<[1], [0], [0], [1], [0, 0, 1, 1], [], []>} : vector<8x128xf32>, vector<128x128xf32>, vector<8x128xf32> -> vector<8x128xf32>
    %c0_9 = arith.constant 0 : index
    %c0_10 = arith.constant 0 : index
    %10 = vector.load %arg5[%c0_9, %c0_10] : memref<1x128xf32, #tpu.memory_space<vmem>>, vector<1x128xf32>
    %11 = vector.broadcast %10 : vector<1x128xf32> to vector<8x128xf32>
    %12 = arith.addf %9, %11 : vector<8x128xf32>
    %cst_11 = arith.constant 0.000000e+00 : f32
    %13 = vector.broadcast %cst_11 : f32 to vector<8x128xf32>
    %14 = arith.maximumf %12, %13 : vector<8x128xf32>
    %c0_12 = arith.constant 0 : index
    %c0_13 = arith.constant 0 : index
    %15 = vector.load %arg6[%c0_12, %c0_13] : memref<128x3xf32, #tpu.memory_space<vmem>>, vector<128x3xf32>
    %cst_14 = arith.constant dense<0.000000e+00> : vector<8x3xf32>
    %16 = tpu.matmul %14, %15, %cst_14 {dimension_numbers = #tpu.dot_dimension_numbers<[1], [0], [0], [1], [0, 0, 1, 1], [], []>} : vector<8x128xf32>, vector<128x3xf32>, vector<8x3xf32> -> vector<8x3xf32>
    %c0_15 = arith.constant 0 : index
    %c0_16 = arith.constant 0 : index
    %17 = vector.load %arg7[%c0_15, %c0_16] : memref<1x3xf32, #tpu.memory_space<vmem>>, vector<1x3xf32>
    %18 = vector.broadcast %17 : vector<1x3xf32> to vector<8x3xf32>
    %19 = arith.addf %16, %18 : vector<8x3xf32>
    %cst_17 = arith.constant 0.000000e+00 : f32
    %20 = vector.broadcast %cst_17 : f32 to vector<8x3xf32>
    %21 = arith.maximumf %19, %20 : vector<8x3xf32>
    %c0_18 = arith.constant 0 : index
    %c0_19 = arith.constant 0 : index
    %22 = vector.load %arg8[%c0_18, %c0_19] : memref<8x3xf32, #tpu.memory_space<vmem>>, vector<8x3xf32>
    tpu.vector_store %arg8[%c0_18, %c0_19], %21 {strides = array<i32>} : memref<8x3xf32, #tpu.memory_space<vmem>>, vector<8x3xf32>,
    return
  }
  func.func @transform_0(%arg0: i32) -> (i32, i32) {
    %c0_i32 = arith.constant 0 : i32
    %c0_i32_0 = arith.constant 0 : i32
    return %arg0, %c0_i32 : i32, i32
  }
  func.func @transform_1(%arg0: i32) -> (i32, i32) {
    %c0_i32 = arith.constant 0 : i32
    %c0_i32_0 = arith.constant 0 : i32
    %c0_i32_1 = arith.constant 0 : i32
    return %c0_i32, %c0_i32_0 : i32, i32
  }
  func.func @transform_2(%arg0: i32) -> (i32, i32) {
    %c0_i32 = arith.constant 0 : i32
    %c0_i32_0 = arith.constant 0 : i32
    %c0_i32_1 = arith.constant 0 : i32
    return %c0_i32, %c0_i32_0 : i32, i32
  }
  func.func @transform_3(%arg0: i32) -> (i32, i32) {
    %c0_i32 = arith.constant 0 : i32
    %c0_i32_0 = arith.constant 0 : i32
    %c0_i32_1 = arith.constant 0 : i32
    return %c0_i32, %c0_i32_0 : i32, i32
  }
  func.func @transform_4(%arg0: i32) -> (i32, i32) {
    %c0_i32 = arith.constant 0 : i32
    %c0_i32_0 = arith.constant 0 : i32
    %c0_i32_1 = arith.constant 0 : i32
    return %c0_i32, %c0_i32_0 : i32, i32
  }
  func.func @transform_5(%arg0: i32) -> (i32, i32) {
    %c0_i32 = arith.constant 0 : i32
    %c0_i32_0 = arith.constant 0 : i32
    %c0_i32_1 = arith.constant 0 : i32
    return %c0_i32, %c0_i32_0 : i32, i32
  }
  func.func @transform_6(%arg0: i32) -> (i32, i32) {
    %c0_i32 = arith.constant 0 : i32
    %c0_i32_0 = arith.constant 0 : i32
    %c0_i32_1 = arith.constant 0 : i32
    return %c0_i32, %c0_i32_0 : i32, i32
  }
  func.func @transform_7(%arg0: i32) -> (i32, i32) {
    %c0_i32 = arith.constant 0 : i32
    %c0_i32_0 = arith.constant 0 : i32
    return %arg0, %c0_i32 : i32, i32
  }
}

</mosaic_0001>

<llo_original>
// kernel: kalmannet_forward.1
$region0: #{kalmannet_forward.1}
  #allocation0 [shape = 'u32[]', space=smem, size = 0x4, offset = 0x4, fixed_abs, tag = 'smem constant byte address 0x4 - core index']
  #allocation1 [shape = 'u32[144,128]{1,0:T(1,128)}', space=vmem, size = 0x12000, scoped, tag = 'internal scratch']
  %s0 = inlined_call_operand.vmem [shape: f32[8,200], index: 0, kind: input, shape index: {}]
  %s1 = inlined_call_operand.hbm [shape: f32[200,128], index: 1, kind: input, shape index: {}]
  %s2 = inlined_call_operand.vmem [shape: f32[1,128], index: 2, kind: input, shape index: {}]
  %s3 = inlined_call_operand.vmem [shape: f32[128,128], index: 3, kind: input, shape index: {}]
  %s4 = inlined_call_operand.vmem [shape: f32[1,128], index: 4, kind: input, shape index: {}]
  %s5 = inlined_call_operand.vmem [shape: f32[128,3], index: 5, kind: input, shape index: {}]
  %s6 = inlined_call_operand.vmem [shape: f32[1,3], index: 6, kind: input, shape index: {}]
  %s7 = inlined_call_operand.vmem [shape: f32[8,3], index: 7, kind: output, shape index: {}]
  %s8 = sld [smem:[#allocation0]]
  $region42: #{kalmannet_forward.1} parent=0
    _
  %s10 = ssub.s32 1, %s8
  %s11 = scalar_select 0, %s10, %s8
  $region1: #{kalmannet_forward.1} parent=0
    #allocation2 [shape = 'u8[102400]{0}', space=vmem, size = 0x19000, scoped, tag = 'input window, operand 1, single buffered']
    #allocation3 [shape = 's32[1]{0}', space=sflag, size = 0x4, scoped, tag = 'scoped memory for kalmannet_forward.1']
    %12 = vsyncpa [#allocation3], 0
    // Predicated region
    $region2: #{kalmannet_forward.1} parent=1 // pred_check
      _
    $region3: #{kalmannet_forward.1} parent=1 // pred_check_branch
      %14 = sbr.rel (0) target = $region5
    $region4: #{kalmannet_forward.1} parent=1 // pred_region
      _
    $region5: #{kalmannet_forward.1} parent=1 // pred_fallthru
      _
    // Predicated region
    $region6: #{kalmannet_forward.1} parent=1 // pred_check
      _
    $region7: #{kalmannet_forward.1} parent=1 // pred_check_branch
      %16 = sbr.rel (0) target = $region9
    $region8: #{kalmannet_forward.1} parent=1 // pred_region
      %s18 = ssub.s32 3200, 3200
      %19 = vsyncadd [#allocation3], %s18
      %s20 = sshll.u32 [#allocation2], 4
      %s21 = int_to_ptr.vmem [resolvable:$true] %s20
      %26 = dma.hbm_to_vmem [thread:$0]  %s1, 3200, %s21, [#allocation3], 128, 128, 8
    $region9: #{kalmannet_forward.1} parent=1 // pred_fallthru
      _
    // Predicated region
    $region10: #{kalmannet_forward.1} parent=1 // pred_check
      _
    $region11: #{kalmannet_forward.1} parent=1 // pred_check_branch
      %28 = sbr.rel (0) target = $region13
    $region12: #{kalmannet_forward.1} parent=1 // pred_region
      _
    $region13: #{kalmannet_forward.1} parent=1 // pred_fallthru
      _
    // Predicated region
    $region14: #{kalmannet_forward.1} parent=1 // pred_check
      _
    $region15: #{kalmannet_forward.1} parent=1 // pred_check_branch
      %30 = sbr.rel (0) target = $region17
    $region16: #{kalmannet_forward.1} parent=1 // pred_region
      _
    $region17: #{kalmannet_forward.1} parent=1 // pred_fallthru
      _
    // Predicated region
    $region18: #{kalmannet_forward.1} parent=1 // pred_check
      _
    $region19: #{kalmannet_forward.1} parent=1 // pred_check_branch
      %32 = sbr.rel (0) target = $region21
    $region20: #{kalmannet_forward.1} parent=1 // pred_region
      _
    $region21: #{kalmannet_forward.1} parent=1 // pred_fallthru
      _
    // Predicated region
    $region22: #{kalmannet_forward.1} parent=1 // pred_check
      _
    $region23: #{kalmannet_forward.1} parent=1 // pred_check_branch
      %34 = sbr.rel (0) target = $region25
    $region24: #{kalmannet_forward.1} parent=1 // pred_region
      _
    $region25: #{kalmannet_forward.1} parent=1 // pred_fallthru
      _
    // Predicated region
    $region26: #{kalmannet_forward.1} parent=1 // pred_check
      _
    $region27: #{kalmannet_forward.1} parent=1 // pred_check_branch
      %36 = sbr.rel (0) target = $region29
    $region28: #{kalmannet_forward.1} parent=1 // pred_region
      _
    $region29: #{kalmannet_forward.1} parent=1 // pred_fallthru
      _
    // Predicated region
    $region30: #{kalmannet_forward.1} parent=1 // pred_check
      _
    $region31: #{kalmannet_forward.1} parent=1 // pred_check_branch
      %38 = sbr.rel (0) target = $region33
    $region32: #{kalmannet_forward.1} parent=1 // pred_region
      %39 = dma.done [#allocation3], 3200
    $region33: #{kalmannet_forward.1} parent=1 // pred_fallthru
      _
    %v40 = vld [vmem:[%s0] sm:$0xff]
    %v41 = vld [vmem:[%s0 + $0x8] sm:$0xff]
    %v42 = vld [vmem:[#allocation2] sm:$0xff]
    %v43 = vld [vmem:[#allocation2 + $0x8] sm:$0xff]
    %v44 = vld [vmem:[#allocation2 + $0x10] sm:$0xff]
    %v45 = vld [vmem:[#allocation2 + $0x18] sm:$0xff]
    %v46 = vld [vmem:[#allocation2 + $0x20] sm:$0xff]
    %v47 = vld [vmem:[#allocation2 + $0x28] sm:$0xff]
    %v48 = vld [vmem:[#allocation2 + $0x30] sm:$0xff]
    %v49 = vld [vmem:[#allocation2 + $0x38] sm:$0xff]
    %v50 = vld [vmem:[#allocation2 + $0x40] sm:$0xff]
    %v51 = vld [vmem:[#allocation2 + $0x48] sm:$0xff]
    %v52 = vld [vmem:[#allocation2 + $0x50] sm:$0xff]
    %v53 = vld [vmem:[#allocation2 + $0x58] sm:$0xff]
    %v54 = vld [vmem:[#allocation2 + $0x60] sm:$0xff]
    %v55 = vld [vmem:[#allocation2 + $0x68] sm:$0xff]
    %v56 = vld [vmem:[#allocation2 + $0x70] sm:$0xff]
    %v57 = vld [vmem:[#allocation2 + $0x78] sm:$0xff]
    %v58 = vld [vmem:[#allocation2 + $0x80] sm:$0xff]
    %v59 = vld [vmem:[#allocation2 + $0x88] sm:$0xff]
    %v60 = vld [vmem:[#allocation2 + $0x90] sm:$0xff]
    %v61 = vld [vmem:[#allocation2 + $0x98] sm:$0xff]
    %v62 = vld [vmem:[#allocation2 + $0xa0] sm:$0xff]
    %v63 = vld [vmem:[#allocation2 + $0xa8] sm:$0xff]
    %v64 = vld [vmem:[#allocation2 + $0xb0] sm:$0xff]
    %v65 = vld [vmem:[#allocation2 + $0xb8] sm:$0xff]
    %v66 = vld [vmem:[#allocation2 + $0xc0] sm:$0xff]
    %v67 = vld [vmem:[%s2] sm:$0x1]
    %v69 = vlaneseq
    %v70 = vshrl.u32 %v69, 7
    %v71 = vsub.s32 0, %v70
    %v72 = vrot.slane %v67, %v71
    %vm74 = vcmask 588800
    %v76 = vsel %vm74, %v41, 0
    %78 = vmatprep.subr.mxu0 0.0
    %79 = vmatpush1.msra.mxu0 %v42
    %80 = vmatprep.subr.mxu0 0.0
    %81 = vmatpush1.msra.mxu0 %v43
    %82 = vmatprep.subr.mxu0 0.0
    %83 = vmatpush1.msra.mxu0 %v44
    %84 = vmatprep.subr.mxu0 0.0
    %85 = vmatpush1.msra.mxu0 %v45
    %86 = vmatprep.subr.mxu0 0.0
    %87 = vmatpush1.msra.mxu0 %v46
    %88 = vmatprep.subr.mxu0 0.0
    %89 = vmatpush1.msra.mxu0 %v47
    %90 = vmatprep.subr.mxu0 0.0
    %91 = vmatpush1.msra.mxu0 %v48
    %92 = vmatprep.subr.mxu0 0.0
    %93 = vmatpush1.msra.mxu0 %v49
    %94 = vmatprep.subr.mxu0 0.0
    %95 = vmatpush1.msra.mxu0 %v50
    %96 = vmatprep.subr.mxu0 0.0
    %97 = vmatpush1.msra.mxu0 %v51
    %98 = vmatprep.subr.mxu0 0.0
    %99 = vmatpush1.msra.mxu0 %v52
    %100 = vmatprep.subr.mxu0 0.0
    %101 = vmatpush1.msra.mxu0 %v53
    %102 = vmatprep.subr.mxu0 0.0
    %103 = vmatpush1.msra.mxu0 %v54
    %104 = vmatprep.subr.mxu0 0.0
    %105 = vmatpush1.msra.mxu0 %v55
    %106 = vmatprep.subr.mxu0 0.0
    %107 = vmatpush1.msra.mxu0 %v56
    %108 = vmatprep.subr.mxu0 0.0
    %109 = vmatpush1.msra.mxu0 %v57
    %110 = vmatprep.subr.mxu0 0.0
    %111 = vmatpush1.msra.mxu0 %v58
    %112 = vmatprep.subr.mxu0 0.0
    %113 = vmatpush1.msra.mxu0 %v59
    %114 = vmatprep.subr.mxu0 0.0
    %115 = vmatpush1.msra.mxu0 %v60
    %116 = vmatprep.subr.mxu0 0.0
    %117 = vmatpush1.msra.mxu0 %v61
    %118 = vmatprep.subr.mxu0 0.0
    %119 = vmatpush1.msra.mxu0 %v62
    %120 = vmatprep.subr.mxu0 0.0
    %121 = vmatpush1.msra.mxu0 %v63
    %122 = vmatprep.subr.mxu0 0.0
    %123 = vmatpush1.msra.mxu0 %v64
    %124 = vmatprep.subr.mxu0 0.0
    %125 = vmatpush1.msra.mxu0 %v65
    %126 = vmatprep.subr.mxu0 0.0
    %127 = vmatpush1.msra.mxu0 %v66
    %128 = vmatprep.subr.mxu0 0.0
    %129 = vmatpush1.msra.mxu0 0.0
    %130 = vmatprep.subr.mxu0 0.0
    %131 = vmatpush1.msra.mxu0 0.0
    %132 = vmatprep.subr.mxu0 0.0
    %133 = vmatpush1.msra.mxu0 0.0
    %134 = vmatprep.subr.mxu0 0.0
    %135 = vmatpush1.msra.mxu0 0.0
    %136 = vmatprep.subr.mxu0 0.0
    %137 = vmatpush1.msra.mxu0 0.0
    %138 = vmatprep.subr.mxu0 0.0
    %139 = vmatpush1.msra.mxu0 0.0
    %140 = vmatprep.subr.mxu0 0.0
    %141 = vmatpush1.msra.mxu0 0.0
    %142 = vmatprep.mubr.f32.mxu0 %v76
    %143 = vmatmul.mubr.f32.gmra.mrb[0].mxu0 %v40
    %v144 = vpop.f32.mrb[0].mxu0
    %v145 = vadd.f32 %v72, %v144
    %v146 = vpop.f32.mrb[0].mxu0
    %147 = vdwg.mxu0
    %v148 = vmax.f32 %v145, 0.0
    %v149 = vld [vmem:[%s3] sm:$0xff]
    %v150 = vld [vmem:[%s3 + $0x8] sm:$0xff]
    %v151 = vld [vmem:[%s3 + $0x10] sm:$0xff]
    %v152 = vld [vmem:[%s3 + $0x18] sm:$0xff]
    %v153 = vld [vmem:[%s3 + $0x20] sm:$0xff]
    %v154 = vld [vmem:[%s3 + $0x28] sm:$0xff]
    %v155 = vld [vmem:[%s3 + $0x30] sm:$0xff]
    %v156 = vld [vmem:[%s3 + $0x38] sm:$0xff]
    %v157 = vld [vmem:[%s3 + $0x40] sm:$0xff]
    %v158 = vld [vmem:[%s3 + $0x48] sm:$0xff]
    %v159 = vld [vmem:[%s3 + $0x50] sm:$0xff]
    %v160 = vld [vmem:[%s3 + $0x58] sm:$0xff]
    %v161 = vld [vmem:[%s3 + $0x60] sm:$0xff]
    %v162 = vld [vmem:[%s3 + $0x68] sm:$0xff]
    %v163 = vld [vmem:[%s3 + $0x70] sm:$0xff]
    %v164 = vld [vmem:[%s3 + $0x78] sm:$0xff]
    %v165 = vld [vmem:[%s4] sm:$0x1]
    %v167 = vlaneseq
    %v168 = vshrl.u32 %v167, 7
    %v169 = vsub.s32 0, %v168
    %v170 = vrot.slane %v165, %v169
    %172 = vmatprep.subr.mxu0 0.0
    %173 = vmatpush1.msra.mxu0 %v149
    %174 = vmatprep.subr.mxu0 0.0
    %175 = vmatpush1.msra.mxu0 %v150
    %176 = vmatprep.subr.mxu0 0.0
    %177 = vmatpush1.msra.mxu0 %v151
    %178 = vmatprep.subr.mxu0 0.0
    %179 = vmatpush1.msra.mxu0 %v152
    %180 = vmatprep.subr.mxu0 0.0
    %181 = vmatpush1.msra.mxu0 %v153
    %182 = vmatprep.subr.mxu0 0.0
    %183 = vmatpush1.msra.mxu0 %v154
    %184 = vmatprep.subr.mxu0 0.0
    %185 = vmatpush1.msra.mxu0 %v155
    %186 = vmatprep.subr.mxu0 0.0
    %187 = vmatpush1.msra.mxu0 %v156
    %188 = vmatprep.subr.mxu0 0.0
    %189 = vmatpush1.msra.mxu0 %v157
    %190 = vmatprep.subr.mxu0 0.0
    %191 = vmatpush1.msra.mxu0 %v158
    %192 = vmatprep.subr.mxu0 0.0
    %193 = vmatpush1.msra.mxu0 %v159
    %194 = vmatprep.subr.mxu0 0.0
    %195 = vmatpush1.msra.mxu0 %v160
    %196 = vmatprep.subr.mxu0 0.0
    %197 = vmatpush1.msra.mxu0 %v161
    %198 = vmatprep.subr.mxu0 0.0
    %199 = vmatpush1.msra.mxu0 %v162
    %200 = vmatprep.subr.mxu0 0.0
    %201 = vmatpush1.msra.mxu0 %v163
    %202 = vmatprep.subr.mxu0 0.0
    %203 = vmatpush1.msra.mxu0 %v164
    %204 = vmatprep.subr.mxu0 0.0
    %205 = vmatpush1.msra.mxu0 0.0
    %206 = vmatprep.subr.mxu0 0.0
    %207 = vmatpush1.msra.mxu0 0.0
    %208 = vmatprep.subr.mxu0 0.0
    %209 = vmatpush1.msra.mxu0 0.0
    %210 = vmatprep.subr.mxu0 0.0
    %211 = vmatpush1.msra.mxu0 0.0
    %212 = vmatprep.subr.mxu0 0.0
    %213 = vmatpush1.msra.mxu0 0.0
    %214 = vmatprep.subr.mxu0 0.0
    %215 = vmatpush1.msra.mxu0 0.0
    %216 = vmatprep.subr.mxu0 0.0
    %217 = vmatpush1.msra.mxu0 0.0
    %218 = vmatprep.subr.mxu0 0.0
    %219 = vmatpush1.msra.mxu0 0.0
    %220 = vmatprep.subr.mxu0 0.0
    %221 = vmatpush1.msra.mxu0 0.0
    %222 = vmatprep.subr.mxu0 0.0
    %223 = vmatpush1.msra.mxu0 0.0
    %224 = vmatprep.subr.mxu0 0.0
    %225 = vmatpush1.msra.mxu0 0.0
    %226 = vmatprep.subr.mxu0 0.0
    %227 = vmatpush1.msra.mxu0 0.0
    %228 = vmatprep.subr.mxu0 0.0
    %229 = vmatpush1.msra.mxu0 0.0
    %230 = vmatprep.subr.mxu0 0.0
    %231 = vmatpush1.msra.mxu0 0.0
    %232 = vmatprep.subr.mxu0 0.0
    %233 = vmatpush1.msra.mxu0 0.0
    %234 = vmatprep.subr.mxu0 0.0
    %235 = vmatpush1.msra.mxu0 0.0
    %236 = vmatprep.mubr.f32.mxu0 0.0
    %237 = vmatmul.mubr.f32.gmra.mrb[0].mxu0 %v148
    %v238 = vpop.f32.mrb[0].mxu0
    %v239 = vadd.f32 %v170, %v238
    %v240 = vpop.f32.mrb[0].mxu0
    %241 = vdwg.mxu0
    %v242 = vmax.f32 %v239, 0.0
    %v243 = vld [vmem:[%s5] sm:$0xff]
    %v244 = vld [vmem:[%s5 + $0x8] sm:$0xff]
    %v245 = vld [vmem:[%s5 + $0x10] sm:$0xff]
    %v246 = vld [vmem:[%s5 + $0x18] sm:$0xff]
    %v247 = vld [vmem:[%s5 + $0x20] sm:$0xff]
    %v248 = vld [vmem:[%s5 + $0x28] sm:$0xff]
    %v249 = vld [vmem:[%s5 + $0x30] sm:$0xff]
    %v250 = vld [vmem:[%s5 + $0x38] sm:$0xff]
    %v251 = vld [vmem:[%s5 + $0x40] sm:$0xff]
    %v252 = vld [vmem:[%s5 + $0x48] sm:$0xff]
    %v253 = vld [vmem:[%s5 + $0x50] sm:$0xff]
    %v254 = vld [vmem:[%s5 + $0x58] sm:$0xff]
    %v255 = vld [vmem:[%s5 + $0x60] sm:$0xff]
    %v256 = vld [vmem:[%s5 + $0x68] sm:$0xff]
    %v257 = vld [vmem:[%s5 + $0x70] sm:$0xff]
    %v258 = vld [vmem:[%s5 + $0x78] sm:$0xff]
    %v259 = vld [vmem:[%s6] sm:$0x1]
    %v261 = vlaneseq
    %v262 = vshrl.u32 %v261, 7
    %v263 = vsub.s32 0, %v262
    %v264 = vrot.slane %v259, %v263
    %266 = vmatprep.subr.mxu0 0.0
    %267 = vmatpush1.msra.mxu0 %v243
    %268 = vmatprep.subr.mxu0 0.0
    %269 = vmatpush1.msra.mxu0 %v244
    %270 = vmatprep.subr.mxu0 0.0
    %271 = vmatpush1.msra.mxu0 %v245
    %272 = vmatprep.subr.mxu0 0.0
    %273 = vmatpush1.msra.mxu0 %v246
    %274 = vmatprep.subr.mxu0 0.0
    %275 = vmatpush1.msra.mxu0 %v247
    %276 = vmatprep.subr.mxu0 0.0
    %277 = vmatpush1.msra.mxu0 %v248
    %278 = vmatprep.subr.mxu0 0.0
    %279 = vmatpush1.msra.mxu0 %v249
    %280 = vmatprep.subr.mxu0 0.0
    %281 = vmatpush1.msra.mxu0 %v250
    %282 = vmatprep.subr.mxu0 0.0
    %283 = vmatpush1.msra.mxu0 %v251
    %284 = vmatprep.subr.mxu0 0.0
    %285 = vmatpush1.msra.mxu0 %v252
    %286 = vmatprep.subr.mxu0 0.0
    %287 = vmatpush1.msra.mxu0 %v253
    %288 = vmatprep.subr.mxu0 0.0
    %289 = vmatpush1.msra.mxu0 %v254
    %290 = vmatprep.subr.mxu0 0.0
    %291 = vmatpush1.msra.mxu0 %v255
    %292 = vmatprep.subr.mxu0 0.0
    %293 = vmatpush1.msra.mxu0 %v256
    %294 = vmatprep.subr.mxu0 0.0
    %295 = vmatpush1.msra.mxu0 %v257
    %296 = vmatprep.subr.mxu0 0.0
    %297 = vmatpush1.msra.mxu0 %v258
    %298 = vmatprep.subr.mxu0 0.0
    %299 = vmatpush1.msra.mxu0 0.0
    %300 = vmatprep.subr.mxu0 0.0
    %301 = vmatpush1.msra.mxu0 0.0
    %302 = vmatprep.subr.mxu0 0.0
    %303 = vmatpush1.msra.mxu0 0.0
    %304 = vmatprep.subr.mxu0 0.0
    %305 = vmatpush1.msra.mxu0 0.0
    %306 = vmatprep.subr.mxu0 0.0
    %307 = vmatpush1.msra.mxu0 0.0
    %308 = vmatprep.subr.mxu0 0.0
    %309 = vmatpush1.msra.mxu0 0.0
    %310 = vmatprep.subr.mxu0 0.0
    %311 = vmatpush1.msra.mxu0 0.0
    %312 = vmatprep.subr.mxu0 0.0
    %313 = vmatpush1.msra.mxu0 0.0
    %314 = vmatprep.subr.mxu0 0.0
    %315 = vmatpush1.msra.mxu0 0.0
    %316 = vmatprep.subr.mxu0 0.0
    %317 = vmatpush1.msra.mxu0 0.0
    %318 = vmatprep.subr.mxu0 0.0
    %319 = vmatpush1.msra.mxu0 0.0
    %320 = vmatprep.subr.mxu0 0.0
    %321 = vmatpush1.msra.mxu0 0.0
    %322 = vmatprep.subr.mxu0 0.0
    %323 = vmatpush1.msra.mxu0 0.0
    %324 = vmatprep.subr.mxu0 0.0
    %325 = vmatpush1.msra.mxu0 0.0
    %326 = vmatprep.subr.mxu0 0.0
    %327 = vmatpush1.msra.mxu0 0.0
    %328 = vmatprep.subr.mxu0 0.0
    %329 = vmatpush1.msra.mxu0 0.0
    %330 = vmatprep.mubr.f32.mxu0 0.0
    %331 = vmatmul.mubr.f32.gmra.mrb[0].mxu0 %v242
    %v332 = vpop.f32.mrb[0].mxu0
    %v333 = vadd.f32 %v264, %v332
    %v334 = vpop.f32.mrb[0].mxu0
    %335 = vdwg.mxu0
    %v336 = vmax.f32 %v333, 0.0
    %vm337 = vcmask 23552
    %338 = vst.msk [vmem:[%s7] sm:$0xff] %vm337, %v336
    // Predicated region
    $region34: #{kalmannet_forward.1} parent=1 // pred_check
      _
    $region35: #{kalmannet_forward.1} parent=1 // pred_check_branch
      %340 = sbr.rel (0) target = $region37
    $region36: #{kalmannet_forward.1} parent=1 // pred_region
      _
    $region37: #{kalmannet_forward.1} parent=1 // pred_fallthru
      _
    // Predicated region
    $region38: #{kalmannet_forward.1} parent=1 // pred_check
      _
    $region39: #{kalmannet_forward.1} parent=1 // pred_check_branch
      %342 = sbr.rel (0) target = $region41
    $region40: #{kalmannet_forward.1} parent=1 // pred_region
      _
    $region41: #{kalmannet_forward.1} parent=1 // pred_fallthru
      _
    %343 = vsyncpa [#allocation3], 1

</llo_original>
